<compile_context>
chip_gen: v7x
topology: tpu7x:2x2x1
jax: 0.10.0
libtpu: 0.0.40
codegen_flags: <defaults>
</compile_context>

<pallas_src>
import jax
import jax.numpy as jnp
from jax.experimental import pallas as pl
from jax.experimental.pallas import tpu as pltpu

_LANES = 128
_SUBLANES = 8
# Per-input, per-pipeline-buffer block target. Two inputs, double-buffered
# -> 4x this (8 MiB) in VMEM: inside 16 MiB (v5e) / 32 MiB (v6e, v7x) defaults.
_TARGET_BLOCK_BYTES = 2 * 1024 * 1024
# Below this element count a plain fused XLA expression beats pallas_call.
_FAST_PATH_ELEMS = 65536


def _round_up(x: int, m: int) -> int:
    return ((x + m - 1) // m) * m


def _smooth_l1_sum_jax(p, t):
    """Plain-JAX SmoothL1(sum); used for the fast path and the <128-elem tail."""
    d = p.astype(jnp.float32) - t.astype(jnp.float32)
    ad = jnp.abs(d)
    return jnp.sum(jnp.where(ad < 1.0, 0.5 * d * d, ad - 0.5))


def _tensorcores_per_chip() -> int:
    """2 for chips whose 'parallel' grid axis shards across 2 TCs, else 1."""
    try:
        kind = jax.devices()[0].device_kind.lower()
    except Exception:
        return 1
    if ("v7" in kind) or ("v4" in kind) or ("v5p" in kind):
        return 2
    return 1


def _make_kernel(rows_valid: int, block_rows: int, blocks_per_part: int):
    def kernel(p_ref, t_ref, o_ref):
        c = pl.program_id(0)   # part (parallel axis)
        i = pl.program_id(1)   # block within part (reduction axis, last)

        # Init runs unconditionally at i == 0 so a part whose blocks are all
        # clamped duplicates still emits a (correct) zero partial.
        @pl.when(i == 0)
        def _init():
            o_ref[...] = jnp.zeros_like(o_ref)

        # UNclamped block id: the clamped-duplicate DMA block (index_map clamps
        # to the last real block) shows up here as rows_in_block <= 0.
        block_id = c * blocks_per_part + i
        row0 = block_id * block_rows
        rows_in_block = rows_valid - row0   # scalar; may be <=0 or >= block_rows

        @pl.when(rows_in_block > 0)
        def _compute():
            # Cast to f32 on the VPU; HBM keeps the caller's dtype (bf16/f32).
            d = p_ref[...].astype(jnp.float32) - t_ref[...].astype(jnp.float32)
            ad = jnp.abs(d)
            loss = jnp.where(ad < 1.0, 0.5 * d * d, ad - 0.5)

            def _accumulate(vals):
                # Reduce to an (8, 128) vreg-shaped partial (1 vadd per input
                # vreg, no cross-lane XLU work) and add into the resident block.
                partial = vals.reshape(
                    block_rows // _SUBLANES, _SUBLANES, _LANES
                ).sum(axis=0)
                o_ref[...] += partial

            # Interior (full) blocks: unmasked path — no iota/compare/select.
            @pl.when(rows_in_block >= block_rows)
            def _full():
                _accumulate(loss)

            # Only the (at most one) partial boundary block pays for the mask.
            # Row-granular compare: no int32 flat-index overflow risk.
            @pl.when(rows_in_block < block_rows)
            def _partial():
                row_idx = jax.lax.broadcasted_iota(
                    jnp.int32, (block_rows, _LANES), 0
                )
                _accumulate(jnp.where(row_idx < rows_in_block, loss, 0.0))

    return kernel


def localization_loss(predictions: jax.Array, targets: jax.Array,
                      *, use_pallas=None, num_parts=None) -> jax.Array:
    """SmoothL1Loss(reduction='sum') over all elements; 0 if predictions is empty."""
    if predictions.size == 0:
        # PyTorch returns torch.tensor(0); we return a float32 zero so both
        # branches have a uniform dtype (jit/grad friendly).
        return jnp.zeros((), dtype=jnp.float32)

    n = predictions.size
    if use_pallas is None:
        use_pallas = n >= _FAST_PATH_ELEMS

    p = predictions.reshape(-1)
    t = targets.reshape(-1)

    if not use_pallas:
        # Tiny inputs (the common boxes x 4 case): fused XLA expression.
        return _smooth_l1_sum_jax(p, t)

    # Keep bf16/f32 in HBM as-is (cast happens in-kernel); other dtypes -> f32.
    if p.dtype not in (jnp.float32, jnp.bfloat16):
        p = p.astype(jnp.float32)
    if t.dtype not in (jnp.float32, jnp.bfloat16):
        t = t.astype(jnp.float32)

    # Lane-align WITHOUT a full-array pad: sum the <128-element tail in plain
    # JAX and feed only the 128-aligned prefix to the kernel.
    n_main = (n // _LANES) * _LANES
    tail = jnp.zeros((), dtype=jnp.float32)
    if n_main < n:
        tail = _smooth_l1_sum_jax(p[n_main:], t[n_main:])
        if n_main == 0:
            return tail
        p = p[:n_main]
        t = t[:n_main]

    rows = n_main // _LANES
    p = p.reshape(rows, _LANES)
    t = t.reshape(rows, _LANES)

    # Byte-targeted block rows (bf16 gets 2x the rows of f32): each pipeline
    # step moves ~2 MiB per input, amortising the ~0.35us/step grid overhead.
    itemsize = max(p.dtype.itemsize, t.dtype.itemsize)
    block_rows = _TARGET_BLOCK_BYTES // (_LANES * itemsize)
    block_rows = max(16, min(block_rows, _round_up(rows, 16)))   # multiple of 16
    num_blocks = pl.cdiv(rows, block_rows)

    if num_parts is None:
        # Two-part "parallel" split only on chips with 2 TensorCores.
        num_parts = min(_tensorcores_per_chip(), num_blocks)
    num_parts = max(1, int(num_parts))
    blocks_per_part = pl.cdiv(num_blocks, num_parts)

    def in_index_map(c, i):
        # Clamp so the DMA never starts past the array; the clamped duplicate
        # block is fully skipped inside the kernel (rows_in_block <= 0).
        return (jnp.minimum(c * blocks_per_part + i, num_blocks - 1), 0)

    out = pl.pallas_call(
        _make_kernel(rows, block_rows, blocks_per_part),
        out_shape=jax.ShapeDtypeStruct((num_parts * _SUBLANES, _LANES), jnp.float32),
        grid_spec=pl.GridSpec(
            grid=(num_parts, blocks_per_part),
            in_specs=[
                pl.BlockSpec((block_rows, _LANES), in_index_map),
                pl.BlockSpec((block_rows, _LANES), in_index_map),
            ],
            out_specs=pl.BlockSpec((_SUBLANES, _LANES), lambda c, i: (c, 0)),
        ),
        compiler_params=pltpu.CompilerParams(
            dimension_semantics=("parallel", "arbitrary"),
        ),
        cost_estimate=pl.CostEstimate(
            flops=5 * n_main,
            transcendentals=0,
            bytes_accessed=p.nbytes + t.nbytes + num_parts * _SUBLANES * _LANES * 4,
        ),
    )(p, t)

    # Final tiny cross-lane reduction of the per-part (8, 128) partial sums.
    return jnp.sum(out) + tail


if __name__ == "__main__":
    key = jax.random.PRNGKey(0)

    # 1) Primary small box-regression case (hits the plain-XLA fast path).
    k1, k2, key = jax.random.split(key, 3)
    p_small = jax.random.normal(k1, (64, 4), dtype=jnp.float32) * 2.0
    t_small = jax.random.normal(k2, (64, 4), dtype=jnp.float32) * 2.0
    l1 = jax.block_until_ready(localization_loss(p_small, t_small))
    r1 = _smooth_l1_sum_jax(p_small, t_small)
    assert jnp.allclose(l1, r1, rtol=1e-5, atol=1e-5), (l1, r1)

    # 2) Force the Pallas kernel on a small, 128-aligned case (single block).
    k1, k2, key = jax.random.split(key, 3)
    p_a = jax.random.normal(k1, (4096, 4), dtype=jnp.float32) * 2.0
    t_a = jax.random.normal(k2, (4096, 4), dtype=jnp.float32) * 2.0
    l2 = jax.block_until_ready(localization_loss(p_a, t_a, use_pallas=True))
    r2 = _smooth_l1_sum_jax(p_a, t_a)
    assert jnp.allclose(l2, r2, rtol=1e-5, atol=1e-3), (l2, r2)

    # 2b) Forced 2-part split where part 1 is entirely a clamped duplicate
    #     block: init runs, compute is skipped, contribution is exactly 0.
    l2b = jax.block_until_ready(
        localization_loss(p_a, t_a, use_pallas=True, num_parts=2))
    assert jnp.allclose(l2b, r2, rtol=1e-5, atol=1e-3), (l2b, r2)

    # 3) Unaligned element count -> plain-JAX tail + 128-aligned kernel prefix.
    k1, k2, key = jax.random.split(key, 3)
    p_u = jax.random.normal(k1, (1037, 4), dtype=jnp.float32) * 3.0
    t_u = jax.random.normal(k2, (1037, 4), dtype=jnp.float32) * 3.0
    l3 = jax.block_until_ready(localization_loss(p_u, t_u, use_pallas=True))
    r3 = _smooth_l1_sum_jax(p_u, t_u)
    assert jnp.allclose(l3, r3, rtol=1e-5, atol=1e-3), (l3, r3)

    # 4) Multi-block with a partial boundary block and an unaligned tail
    #    (auto path: exceeds the fast-path threshold, so the kernel runs).
    k1, k2, key = jax.random.split(key, 3)
    p_big = jax.random.normal(k1, (200001, 4), dtype=jnp.float32)
    t_big = jax.random.normal(k2, (200001, 4), dtype=jnp.float32)
    l4 = jax.block_until_ready(localization_loss(p_big, t_big))
    r4 = _smooth_l1_sum_jax(p_big, t_big)
    assert jnp.allclose(l4, r4, rtol=1e-4, atol=1e-1), (l4, r4)
    l4b = jax.block_until_ready(
        localization_loss(p_big, t_big, use_pallas=True, num_parts=2))
    assert jnp.allclose(l4b, r4, rtol=1e-4, atol=1e-1), (l4b, r4)

    # 5) bf16 inputs stay bf16 in HBM; the f32 cast happens inside the kernel.
    p_b = p_a.astype(jnp.bfloat16)
    t_b = t_a.astype(jnp.bfloat16)
    l5 = jax.block_until_ready(localization_loss(p_b, t_b, use_pallas=True))
    r5 = _smooth_l1_sum_jax(p_b, t_b)
    assert jnp.allclose(l5, r5, rtol=2e-2, atol=2e-1), (l5, r5)

    # 6) Empty-predictions branch (mirrors `return torch.tensor(0)` numerically).
    empty_loss = localization_loss(
        jnp.zeros((0, 4), jnp.float32), jnp.zeros((0, 4), jnp.float32))
    assert float(empty_loss) == 0.0

    print("KERNEL_OK")
</pallas_src>

<mosaic_0001>
module attributes {stable_mosaic.version = 11 : i64} {
  func.func @kernel(%arg0: i32, %arg1: i32, %arg2: memref<128x128xf32, #tpu.memory_space<vmem>>, %arg3: memref<128x128xf32, #tpu.memory_space<vmem>>, %arg4: memref<8x128xf32, #tpu.memory_space<vmem>>) attributes {dimension_semantics = [#tpu.dimension_semantics<parallel>, #tpu.dimension_semantics<arbitrary>], iteration_bounds = array<i64: 1, 1>, scalar_prefetch = 0 : i64, scratch_operands = 0 : i64, tpu.core_type = #tpu.core_type<tc>, window_params = [{transform_indices = @transform_0, window_bounds = array<i64: 128, 128>}, {transform_indices = @transform_1, window_bounds = array<i64: 128, 128>}, {transform_indices = @transform_2, window_bounds = array<i64: 8, 128>}]} {
    %c0_i32 = arith.constant 0 : i32
    %0 = arith.cmpi eq, %arg1, %c0_i32 : i32
    %1 = arith.extui %0 : i1 to i32
    %c0_i32_0 = arith.constant 0 : i32
    %2 = arith.cmpi ne, %1, %c0_i32_0 : i32
    scf.if %2 {
      %cst = arith.constant 0.000000e+00 : f32
      %10 = vector.broadcast %cst : f32 to vector<8x128xf32>
      %c0 = arith.constant 0 : index
      %c0_4 = arith.constant 0 : index
      %11 = vector.load %arg4[%c0, %c0_4] : memref<8x128xf32, #tpu.memory_space<vmem>>, vector<8x128xf32>
      tpu.vector_store %arg4[%c0, %c0_4], %10 {strides = array<i32>} : memref<8x128xf32, #tpu.memory_space<vmem>>, vector<8x128xf32>,
    } else {
    }
    %c1_i32 = arith.constant 1 : i32
    %3 = arith.muli %arg0, %c1_i32 : i32
    %4 = arith.addi %3, %arg1 : i32
    %c128_i32 = arith.constant 128 : i32
    %5 = arith.muli %4, %c128_i32 : i32
    %c128_i32_1 = arith.constant 128 : i32
    %6 = arith.subi %c128_i32_1, %5 : i32
    %c0_i32_2 = arith.constant 0 : i32
    %7 = arith.cmpi sgt, %6, %c0_i32_2 : i32
    %8 = arith.extui %7 : i1 to i32
    %c0_i32_3 = arith.constant 0 : i32
    %9 = arith.cmpi ne, %8, %c0_i32_3 : i32
    scf.if %9 {
      %c0 = arith.constant 0 : index
      %c0_4 = arith.constant 0 : index
      %10 = vector.load %arg2[%c0, %c0_4] : memref<128x128xf32, #tpu.memory_space<vmem>>, vector<128x128xf32>
      %c0_5 = arith.constant 0 : index
      %c0_6 = arith.constant 0 : index
      %11 = vector.load %arg3[%c0_5, %c0_6] : memref<128x128xf32, #tpu.memory_space<vmem>>, vector<128x128xf32>
      %12 = arith.subf %10, %11 : vector<128x128xf32>
      %13 = math.absf %12 : vector<128x128xf32>
      %cst = arith.constant 1.000000e+00 : f32
      %14 = vector.broadcast %cst : f32 to vector<128x128xf32>
      %15 = arith.cmpf olt, %13, %14 : vector<128x128xf32>
      %cst_7 = arith.constant 5.000000e-01 : f32
      %16 = vector.broadcast %cst_7 : f32 to vector<128x128xf32>
      %17 = arith.mulf %16, %12 : vector<128x128xf32>
      %18 = arith.mulf %17, %12 : vector<128x128xf32>
      %cst_8 = arith.constant 5.000000e-01 : f32
      %19 = vector.broadcast %cst_8 : f32 to vector<128x128xf32>
      %20 = arith.subf %13, %19 : vector<128x128xf32>
      %21 = arith.select %15, %18, %20 : vector<128x128xi1>, vector<128x128xf32>
      %c128_i32_9 = arith.constant 128 : i32
      %22 = arith.cmpi sge, %6, %c128_i32_9 : i32
      %23 = arith.extui %22 : i1 to i32
      %c0_i32_10 = arith.constant 0 : i32
      %24 = arith.cmpi ne, %23, %c0_i32_10 : i32
      scf.if %24 {
        %28 = vector.shape_cast %21 : vector<128x128xf32> to vector<16x8x128xf32>
        %cst_13 = arith.constant dense<0.000000e+00> : vector<8x128xf32>
        %29 = vector.multi_reduction <add>, %28, %cst_13 [0] : vector<16x8x128xf32> to vector<8x128xf32>
        %c0_14 = arith.constant 0 : index
        %c0_15 = arith.constant 0 : index
        %30 = vector.load %arg4[%c0_14, %c0_15] : memref<8x128xf32, #tpu.memory_space<vmem>>, vector<8x128xf32>
        %31 = arith.addf %30, %29 : vector<8x128xf32>
        %c0_16 = arith.constant 0 : index
        %c0_17 = arith.constant 0 : index
        %32 = vector.load %arg4[%c0_16, %c0_17] : memref<8x128xf32, #tpu.memory_space<vmem>>, vector<8x128xf32>
        tpu.vector_store %arg4[%c0_16, %c0_17], %31 {strides = array<i32>} : memref<8x128xf32, #tpu.memory_space<vmem>>, vector<8x128xf32>,
      } else {
      }
      %c128_i32_11 = arith.constant 128 : i32
      %25 = arith.cmpi slt, %6, %c128_i32_11 : i32
      %26 = arith.extui %25 : i1 to i32
      %c0_i32_12 = arith.constant 0 : i32
      %27 = arith.cmpi ne, %26, %c0_i32_12 : i32
      scf.if %27 {
        %28 = tpu.iota {dimensions = array<i32: 0>} : vector<128x128xi32>
        %29 = vector.broadcast %6 : i32 to vector<128x128xi32>
        %30 = arith.cmpi slt, %28, %29 : vector<128x128xi32>
        %cst_13 = arith.constant 0.000000e+00 : f32
        %31 = vector.broadcast %cst_13 : f32 to vector<128x128xf32>
        %32 = arith.select %30, %21, %31 : vector<128x128xi1>, vector<128x128xf32>
        %33 = vector.shape_cast %32 : vector<128x128xf32> to vector<16x8x128xf32>
        %cst_14 = arith.constant dense<0.000000e+00> : vector<8x128xf32>
        %34 = vector.multi_reduction <add>, %33, %cst_14 [0] : vector<16x8x128xf32> to vector<8x128xf32>
        %c0_15 = arith.constant 0 : index
        %c0_16 = arith.constant 0 : index
        %35 = vector.load %arg4[%c0_15, %c0_16] : memref<8x128xf32, #tpu.memory_space<vmem>>, vector<8x128xf32>
        %36 = arith.addf %35, %34 : vector<8x128xf32>
        %c0_17 = arith.constant 0 : index
        %c0_18 = arith.constant 0 : index
        %37 = vector.load %arg4[%c0_17, %c0_18] : memref<8x128xf32, #tpu.memory_space<vmem>>, vector<8x128xf32>
        tpu.vector_store %arg4[%c0_17, %c0_18], %36 {strides = array<i32>} : memref<8x128xf32, #tpu.memory_space<vmem>>, vector<8x128xf32>,
      } else {
      }
    } else {
    }
    return
  }
  func.func @transform_0(%arg0: i32, %arg1: i32) -> (i32, i32) {
    %c1_i32 = arith.constant 1 : i32
    %0 = arith.muli %arg0, %c1_i32 : i32
    %1 = arith.addi %0, %arg1 : i32
    %c0_i32 = arith.constant 0 : i32
    %2 = arith.minsi %1, %c0_i32 : i32
    %c0_i32_0 = arith.constant 0 : i32
    %c0_i32_1 = arith.constant 0 : i32
    return %2, %c0_i32_0 : i32, i32
  }
  func.func @transform_1(%arg0: i32, %arg1: i32) -> (i32, i32) {
    %c1_i32 = arith.constant 1 : i32
    %0 = arith.muli %arg0, %c1_i32 : i32
    %1 = arith.addi %0, %arg1 : i32
    %c0_i32 = arith.constant 0 : i32
    %2 = arith.minsi %1, %c0_i32 : i32
    %c0_i32_0 = arith.constant 0 : i32
    %c0_i32_1 = arith.constant 0 : i32
    return %2, %c0_i32_0 : i32, i32
  }
  func.func @transform_2(%arg0: i32, %arg1: i32) -> (i32, i32) {
    %c0_i32 = arith.constant 0 : i32
    %c0_i32_0 = arith.constant 0 : i32
    return %arg0, %c0_i32 : i32, i32
  }
}

</mosaic_0001>

<llo_original>
// kernel: tpu_custom_call.1
$region0: #{tpu_custom_call.1}
  #allocation0 [shape = 'u32[]', space=smem, size = 0x4, offset = 0x4, fixed_abs, tag = 'smem constant byte address 0x4 - core index']
  #allocation1 [shape = 'u32[144,128]{1,0:T(1,128)}', space=vmem, size = 0x12000, scoped, tag = 'internal scratch']
  %s0 = inlined_call_operand.hbm [shape: f32[128,128], index: 0, kind: input, shape index: {}]
  %s1 = inlined_call_operand.hbm [shape: f32[128,128], index: 1, kind: input, shape index: {}]
  %s2 = inlined_call_operand.hbm [shape: f32[8,128], index: 2, kind: output, shape index: {}]
  %s3 = sld [smem:[#allocation0]]
  $region42: #{tpu_custom_call.1} parent=0
    _
  %s5 = ssub.s32 1, %s3
  %s6 = scalar_select 0, %s5, %s3
  $region1: #{tpu_custom_call.1} parent=0
    #allocation2 [shape = 'u8[65536]{0}', space=vmem, size = 0x10000, scoped, tag = 'input window, operand 0, single buffered']
    #allocation3 [shape = 's32[1]{0}', space=sflag, size = 0x4, scoped, tag = 'scoped memory for tpu_custom_call.1']
    #allocation4 [shape = 's32[1]{0}', space=sflag, size = 0x4, scoped, tag = 'scoped memory for tpu_custom_call.1']
    #allocation5 [shape = 'u8[65536]{0}', space=vmem, size = 0x10000, scoped, tag = 'input window, operand 1, single buffered']
    #allocation6 [shape = 's32[1]{0}', space=sflag, size = 0x4, scoped, tag = 'scoped memory for tpu_custom_call.1']
    #allocation7 [shape = 'u8[4096]{0}', space=vmem, size = 0x1000, scoped, tag = 'output window, operand 0, single buffered']
    %7 = vsyncpa [#allocation3], 0
    %8 = vsyncpa [#allocation6], 0
    %9 = vsyncpa [#allocation4], 0
    // Predicated region
    $region2: #{tpu_custom_call.1} parent=1 // pred_check
      _
    $region3: #{tpu_custom_call.1} parent=1 // pred_check_branch
      %11 = sbr.rel (0) target = $region5
    $region4: #{tpu_custom_call.1} parent=1 // pred_region
      %s12 = sadd.s32 0, 0
      %p13 = scmp.lt.s32.totalorder %s12, 0
      %s14 = scalar_select %p13, %s12, 0
      %s15 = smul.u32 16, %s14
      %s17 = ssub.s32 2048, 2048
      %18 = vsyncadd [#allocation3], %s17
      %s19 = smul.addr %s15, 128
      %s20 = scalar_lea.hbm %s0, %s19
      %s21 = sshll.u32 [#allocation2], 4
      %s22 = int_to_ptr.vmem [resolvable:$true] %s21
      %27 = dma.hbm_to_vmem [thread:$0]  %s20, 2048, %s22, [#allocation3], 128, 128, 8
    $region5: #{tpu_custom_call.1} parent=1 // pred_fallthru
      _
    // Predicated region
    $region6: #{tpu_custom_call.1} parent=1 // pred_check
      _
    $region7: #{tpu_custom_call.1} parent=1 // pred_check_branch
      %29 = sbr.rel (0) target = $region9
    $region8: #{tpu_custom_call.1} parent=1 // pred_region
      %s30 = sadd.s32 0, 0
      %p31 = scmp.lt.s32.totalorder %s30, 0
      %s32 = scalar_select %p31, %s30, 0
      %s33 = smul.u32 16, %s32
      %s35 = ssub.s32 2048, 2048
      %36 = vsyncadd [#allocation6], %s35
      %s37 = smul.addr %s33, 128
      %s38 = scalar_lea.hbm %s1, %s37
      %s39 = sshll.u32 [#allocation5], 4
      %s40 = int_to_ptr.vmem [resolvable:$true] %s39
      %45 = dma.hbm_to_vmem [thread:$0]  %s38, 2048, %s40, [#allocation6], 128, 128, 8
    $region9: #{tpu_custom_call.1} parent=1 // pred_fallthru
      _
    // Predicated region
    $region10: #{tpu_custom_call.1} parent=1 // pred_check
      _
    $region11: #{tpu_custom_call.1} parent=1 // pred_check_branch
      %47 = sbr.rel (0) target = $region13
    $region12: #{tpu_custom_call.1} parent=1 // pred_region
      %48 = dma.done [#allocation3], 2048
    $region13: #{tpu_custom_call.1} parent=1 // pred_fallthru
      _
    // Predicated region
    $region14: #{tpu_custom_call.1} parent=1 // pred_check
      _
    $region15: #{tpu_custom_call.1} parent=1 // pred_check_branch
      %50 = sbr.rel (0) target = $region17
    $region16: #{tpu_custom_call.1} parent=1 // pred_region
      %51 = dma.done [#allocation6], 2048
    $region17: #{tpu_custom_call.1} parent=1 // pred_fallthru
      _
    %s52 = sadd.s32 0, 0
    %p53 = scmp.lt.s32.totalorder %s52, 0
    %s54 = scalar_select %p53, %s52, 0
    %s55 = smul.u32 16, %s54
    %s56 = sadd.s32 0, 0
    %p57 = scmp.lt.s32.totalorder %s56, 0
    %s58 = scalar_select %p57, %s56, 0
    %s59 = smul.u32 16, %s58
    %p60 = scmp.eq.s32.totalorder 0, 0
    // Predicated region
    $region18: #{tpu_custom_call.1} parent=1 // pred_check
      %p61 = pneg %p60
    $region19: #{tpu_custom_call.1} parent=1 // pred_check_branch
      %63 = sbr.rel (%p61) target = $region21
    $region20: #{tpu_custom_call.1} parent=1 // pred_region
      %64 = vst [vmem:[#allocation7] sm:$0xff] 0.0
    $region21: #{tpu_custom_call.1} parent=1 // pred_fallthru
      _
    %s65 = sadd.s32 0, 0
    %s66 = smul.u32 %s65, 128
    %s67 = ssub.s32 128, %s66
    %p68 = scmp.gt.s32.totalorder %s67, 0
    // Predicated region
    $region22: #{tpu_custom_call.1} parent=1 // pred_check
      %p69 = pneg %p68
    $region23: #{tpu_custom_call.1} parent=1 // pred_check_branch
      %71 = sbr.rel (%p69) target = $region25
    $region24: #{tpu_custom_call.1} parent=1 // pred_region
      %v72 = vld [vmem:[#allocation2] sm:$0xff]
      %v73 = vld [vmem:[#allocation2 + $0x8] sm:$0xff]
      %v74 = vld [vmem:[#allocation2 + $0x10] sm:$0xff]
      %v75 = vld [vmem:[#allocation2 + $0x18] sm:$0xff]
      %v76 = vld [vmem:[#allocation2 + $0x20] sm:$0xff]
      %v77 = vld [vmem:[#allocation2 + $0x28] sm:$0xff]
      %v78 = vld [vmem:[#allocation2 + $0x30] sm:$0xff]
      %v79 = vld [vmem:[#allocation2 + $0x38] sm:$0xff]
      %v80 = vld [vmem:[#allocation2 + $0x40] sm:$0xff]
      %v81 = vld [vmem:[#allocation2 + $0x48] sm:$0xff]
      %v82 = vld [vmem:[#allocation2 + $0x50] sm:$0xff]
      %v83 = vld [vmem:[#allocation2 + $0x58] sm:$0xff]
      %v84 = vld [vmem:[#allocation2 + $0x60] sm:$0xff]
      %v85 = vld [vmem:[#allocation2 + $0x68] sm:$0xff]
      %v86 = vld [vmem:[#allocation2 + $0x70] sm:$0xff]
      %v87 = vld [vmem:[#allocation2 + $0x78] sm:$0xff]
      %v88 = vld [vmem:[#allocation5] sm:$0xff]
      %v89 = vld [vmem:[#allocation5 + $0x8] sm:$0xff]
      %v90 = vld [vmem:[#allocation5 + $0x10] sm:$0xff]
      %v91 = vld [vmem:[#allocation5 + $0x18] sm:$0xff]
      %v92 = vld [vmem:[#allocation5 + $0x20] sm:$0xff]
      %v93 = vld [vmem:[#allocation5 + $0x28] sm:$0xff]
      %v94 = vld [vmem:[#allocation5 + $0x30] sm:$0xff]
      %v95 = vld [vmem:[#allocation5 + $0x38] sm:$0xff]
      %v96 = vld [vmem:[#allocation5 + $0x40] sm:$0xff]
      %v97 = vld [vmem:[#allocation5 + $0x48] sm:$0xff]
      %v98 = vld [vmem:[#allocation5 + $0x50] sm:$0xff]
      %v99 = vld [vmem:[#allocation5 + $0x58] sm:$0xff]
      %v100 = vld [vmem:[#allocation5 + $0x60] sm:$0xff]
      %v101 = vld [vmem:[#allocation5 + $0x68] sm:$0xff]
      %v102 = vld [vmem:[#allocation5 + $0x70] sm:$0xff]
      %v103 = vld [vmem:[#allocation5 + $0x78] sm:$0xff]
      %v104 = vsub.f32 %v72, %v88
      %v105 = vsub.f32 %v73, %v89
      %v106 = vsub.f32 %v74, %v90
      %v107 = vsub.f32 %v75, %v91
      %v108 = vsub.f32 %v76, %v92
      %v109 = vsub.f32 %v77, %v93
      %v110 = vsub.f32 %v78, %v94
      %v111 = vsub.f32 %v79, %v95
      %v112 = vsub.f32 %v80, %v96
      %v113 = vsub.f32 %v81, %v97
      %v114 = vsub.f32 %v82, %v98
      %v115 = vsub.f32 %v83, %v99
      %v116 = vsub.f32 %v84, %v100
      %v117 = vsub.f32 %v85, %v101
      %v118 = vsub.f32 %v86, %v102
      %v119 = vsub.f32 %v87, %v103
      %v120 = vand.u32 2147483647, %v104
      %v121 = vand.u32 2147483647, %v105
      %v122 = vand.u32 2147483647, %v106
      %v123 = vand.u32 2147483647, %v107
      %v124 = vand.u32 2147483647, %v108
      %v125 = vand.u32 2147483647, %v109
      %v126 = vand.u32 2147483647, %v110
      %v127 = vand.u32 2147483647, %v111
      %v128 = vand.u32 2147483647, %v112
      %v129 = vand.u32 2147483647, %v113
      %v130 = vand.u32 2147483647, %v114
      %v131 = vand.u32 2147483647, %v115
      %v132 = vand.u32 2147483647, %v116
      %v133 = vand.u32 2147483647, %v117
      %v134 = vand.u32 2147483647, %v118
      %v135 = vand.u32 2147483647, %v119
      %vm136 = vcmp.lt.f32.partialorder %v120, 1.0
      %vm137 = vcmp.lt.f32.partialorder %v121, 1.0
      %vm138 = vcmp.lt.f32.partialorder %v122, 1.0
      %vm139 = vcmp.lt.f32.partialorder %v123, 1.0
      %vm140 = vcmp.lt.f32.partialorder %v124, 1.0
      %vm141 = vcmp.lt.f32.partialorder %v125, 1.0
      %vm142 = vcmp.lt.f32.partialorder %v126, 1.0
      %vm143 = vcmp.lt.f32.partialorder %v127, 1.0
      %vm144 = vcmp.lt.f32.partialorder %v128, 1.0
      %vm145 = vcmp.lt.f32.partialorder %v129, 1.0
      %vm146 = vcmp.lt.f32.partialorder %v130, 1.0
      %vm147 = vcmp.lt.f32.partialorder %v131, 1.0
      %vm148 = vcmp.lt.f32.partialorder %v132, 1.0
      %vm149 = vcmp.lt.f32.partialorder %v133, 1.0
      %vm150 = vcmp.lt.f32.partialorder %v134, 1.0
      %vm151 = vcmp.lt.f32.partialorder %v135, 1.0
      %v152 = vmul.f32 %v104, 0.5
      %v153 = vmul.f32 %v105, 0.5
      %v154 = vmul.f32 %v106, 0.5
      %v155 = vmul.f32 %v107, 0.5
      %v156 = vmul.f32 %v108, 0.5
      %v157 = vmul.f32 %v109, 0.5
      %v158 = vmul.f32 %v110, 0.5
      %v159 = vmul.f32 %v111, 0.5
      %v160 = vmul.f32 %v112, 0.5
      %v161 = vmul.f32 %v113, 0.5
      %v162 = vmul.f32 %v114, 0.5
      %v163 = vmul.f32 %v115, 0.5
      %v164 = vmul.f32 %v116, 0.5
      %v165 = vmul.f32 %v117, 0.5
      %v166 = vmul.f32 %v118, 0.5
      %v167 = vmul.f32 %v119, 0.5
      %v168 = vmul.f32 %v152, %v104
      %v169 = vmul.f32 %v153, %v105
      %v170 = vmul.f32 %v154, %v106
      %v171 = vmul.f32 %v155, %v107
      %v172 = vmul.f32 %v156, %v108
      %v173 = vmul.f32 %v157, %v109
      %v174 = vmul.f32 %v158, %v110
      %v175 = vmul.f32 %v159, %v111
      %v176 = vmul.f32 %v160, %v112
      %v177 = vmul.f32 %v161, %v113
      %v178 = vmul.f32 %v162, %v114
      %v179 = vmul.f32 %v163, %v115
      %v180 = vmul.f32 %v164, %v116
      %v181 = vmul.f32 %v165, %v117
      %v182 = vmul.f32 %v166, %v118
      %v183 = vmul.f32 %v167, %v119
      %v184 = vsub.f32 %v120, 0.5
      %v185 = vsub.f32 %v121, 0.5
      %v186 = vsub.f32 %v122, 0.5
      %v187 = vsub.f32 %v123, 0.5
      %v188 = vsub.f32 %v124, 0.5
      %v189 = vsub.f32 %v125, 0.5
      %v190 = vsub.f32 %v126, 0.5
      %v191 = vsub.f32 %v127, 0.5
      %v192 = vsub.f32 %v128, 0.5
      %v193 = vsub.f32 %v129, 0.5
      %v194 = vsub.f32 %v130, 0.5
      %v195 = vsub.f32 %v131, 0.5
      %v196 = vsub.f32 %v132, 0.5
      %v197 = vsub.f32 %v133, 0.5
      %v198 = vsub.f32 %v134, 0.5
      %v199 = vsub.f32 %v135, 0.5
      %v200 = vsel %vm136, %v168, %v184
      %v201 = vsel %vm137, %v169, %v185
      %v202 = vsel %vm138, %v170, %v186
      %v203 = vsel %vm139, %v171, %v187
      %v204 = vsel %vm140, %v172, %v188
      %v205 = vsel %vm141, %v173, %v189
      %v206 = vsel %vm142, %v174, %v190
      %v207 = vsel %vm143, %v175, %v191
      %v208 = vsel %vm144, %v176, %v192
      %v209 = vsel %vm145, %v177, %v193
      %v210 = vsel %vm146, %v178, %v194
      %v211 = vsel %vm147, %v179, %v195
      %v212 = vsel %vm148, %v180, %v196
      %v213 = vsel %vm149, %v181, %v197
      %v214 = vsel %vm150, %v182, %v198
      %v215 = vsel %vm151, %v183, %v199
      %p216 = scmp.ge.s32.totalorder %s67, 128
      // Predicated region
      $region26: #{tpu_custom_call.1} parent=24 // pred_check
        %p217 = pneg %p216
      $region27: #{tpu_custom_call.1} parent=24 // pred_check_branch
        %219 = sbr.rel (%p217) target = $region29
      $region28: #{tpu_custom_call.1} parent=24 // pred_region
        %v220 = vadd.f32 %v200, %v201
        %v221 = vadd.f32 %v220, %v202
        %v222 = vadd.f32 %v221, %v203
        %v223 = vadd.f32 %v222, %v204
        %v224 = vadd.f32 %v223, %v205
        %v225 = vadd.f32 %v224, %v206
        %v226 = vadd.f32 %v225, %v207
        %v227 = vadd.f32 %v226, %v208
        %v228 = vadd.f32 %v227, %v209
        %v229 = vadd.f32 %v228, %v210
        %v230 = vadd.f32 %v229, %v211
        %v231 = vadd.f32 %v230, %v212
        %v232 = vadd.f32 %v231, %v213
        %v233 = vadd.f32 %v232, %v214
        %v234 = vadd.f32 %v233, %v215
        %v235 = vld [vmem:[#allocation7] sm:$0xff]
        %v236 = vadd.f32 %v235, %v234
        %237 = vst [vmem:[#allocation7] sm:$0xff] %v236
      $region29: #{tpu_custom_call.1} parent=24 // pred_fallthru
        _
      %p238 = scmp.lt.s32.totalorder %s67, 128
      // Predicated region
      $region30: #{tpu_custom_call.1} parent=24 // pred_check
        %p239 = pneg %p238
      $region31: #{tpu_custom_call.1} parent=24 // pred_check_branch
        %241 = sbr.rel (%p239) target = $region33
      $region32: #{tpu_custom_call.1} parent=24 // pred_region
        %v242 = vlaneseq
        %v243 = vshrl.u32 %v242, 7
        %v244 = vadd.s32 %v243, 8
        %v245 = vadd.s32 %v243, 16
        %v246 = vadd.s32 %v243, 24
        %v247 = vadd.s32 %v243, 32
        %v248 = vadd.s32 %v243, 40
        %v249 = vadd.s32 %v243, 48
        %v250 = vadd.s32 %v243, 56
        %v251 = vadd.s32 %v243, 64
        %v252 = vadd.s32 %v243, 72
        %v253 = vadd.s32 %v243, 80
        %v254 = vadd.s32 %v243, 88
        %v255 = vadd.s32 %v243, 96
        %v256 = vadd.s32 %v243, 104
        %v257 = vadd.s32 %v243, 112
        %v258 = vadd.s32 %v243, 120
        %v259 = vstv %s67
        %vm260 = vcmp.lt.s32.totalorder %v243, %v259
        %vm261 = vcmp.lt.s32.totalorder %v244, %v259
        %vm262 = vcmp.lt.s32.totalorder %v245, %v259
        %vm263 = vcmp.lt.s32.totalorder %v246, %v259
        %vm264 = vcmp.lt.s32.totalorder %v247, %v259
        %vm265 = vcmp.lt.s32.totalorder %v248, %v259
        %vm266 = vcmp.lt.s32.totalorder %v249, %v259
        %vm267 = vcmp.lt.s32.totalorder %v250, %v259
        %vm268 = vcmp.lt.s32.totalorder %v251, %v259
        %vm269 = vcmp.lt.s32.totalorder %v252, %v259
        %vm270 = vcmp.lt.s32.totalorder %v253, %v259
        %vm271 = vcmp.lt.s32.totalorder %v254, %v259
        %vm272 = vcmp.lt.s32.totalorder %v255, %v259
        %vm273 = vcmp.lt.s32.totalorder %v256, %v259
        %vm274 = vcmp.lt.s32.totalorder %v257, %v259
        %vm275 = vcmp.lt.s32.totalorder %v258, %v259
        %v276 = vsel %vm260, %v200, 0.0
        %v277 = vsel %vm261, %v201, 0.0
        %v278 = vsel %vm262, %v202, 0.0
        %v279 = vsel %vm263, %v203, 0.0
        %v280 = vsel %vm264, %v204, 0.0
        %v281 = vsel %vm265, %v205, 0.0
        %v282 = vsel %vm266, %v206, 0.0
        %v283 = vsel %vm267, %v207, 0.0
        %v284 = vsel %vm268, %v208, 0.0
        %v285 = vsel %vm269, %v209, 0.0
        %v286 = vsel %vm270, %v210, 0.0
        %v287 = vsel %vm271, %v211, 0.0
        %v288 = vsel %vm272, %v212, 0.0
        %v289 = vsel %vm273, %v213, 0.0
        %v290 = vsel %vm274, %v214, 0.0
        %v291 = vsel %vm275, %v215, 0.0
        %v292 = vadd.f32 %v276, %v277
        %v293 = vadd.f32 %v292, %v278
        %v294 = vadd.f32 %v293, %v279
        %v295 = vadd.f32 %v294, %v280
        %v296 = vadd.f32 %v295, %v281
        %v297 = vadd.f32 %v296, %v282
        %v298 = vadd.f32 %v297, %v283
        %v299 = vadd.f32 %v298, %v284
        %v300 = vadd.f32 %v299, %v285
        %v301 = vadd.f32 %v300, %v286
        %v302 = vadd.f32 %v301, %v287
        %v303 = vadd.f32 %v302, %v288
        %v304 = vadd.f32 %v303, %v289
        %v305 = vadd.f32 %v304, %v290
        %v306 = vadd.f32 %v305, %v291
        %v307 = vld [vmem:[#allocation7] sm:$0xff]
        %v308 = vadd.f32 %v307, %v306
        %309 = vst [vmem:[#allocation7] sm:$0xff] %v308
      $region33: #{tpu_custom_call.1} parent=24 // pred_fallthru
        _
    $region25: #{tpu_custom_call.1} parent=1 // pred_fallthru
      _
    // Predicated region
    $region34: #{tpu_custom_call.1} parent=1 // pred_check
      _
    $region35: #{tpu_custom_call.1} parent=1 // pred_check_branch
      %311 = sbr.rel (0) target = $region37
    $region36: #{tpu_custom_call.1} parent=1 // pred_region
      %s313 = ssub.s32 128, 128
      %314 = vsyncadd [#allocation4], %s313
      %s316 = sshll.u32 [#allocation7], 4
      %s317 = int_to_ptr.vmem [resolvable:$true] %s316
      %319 = dma.vmem_to_hbm [thread:$0]  %s317, 128, %s2, [#allocation4]
    $region37: #{tpu_custom_call.1} parent=1 // pred_fallthru
      _
    // Predicated region
    $region38: #{tpu_custom_call.1} parent=1 // pred_check
      _
    $region39: #{tpu_custom_call.1} parent=1 // pred_check_branch
      %321 = sbr.rel (0) target = $region41
    $region40: #{tpu_custom_call.1} parent=1 // pred_region
      %322 = dma.done [#allocation4], 128
    $region41: #{tpu_custom_call.1} parent=1 // pred_fallthru
      _
    %323 = vsyncpa [#allocation3], 1
    %324 = vsyncpa [#allocation6], 1
    %325 = vsyncpa [#allocation4], 1

</llo_original>
